<compile_context>
chip_gen: v5e
topology: v5e:2x2
jax: 0.10.0
libtpu: 0.0.40
codegen_flags: <defaults>
</compile_context>

<pallas_src>
import jax
import jax.numpy as jnp
import numpy as np
from jax.experimental import pallas as pl
from jax.experimental.pallas import tpu as pltpu


def attention_kernel(img_ref, hid_ref, uw_ref, ww_ref, bias_ref, aw_ref,
                     alpha_ref, ctx_ref):
    Bb, L, F = img_ref.shape
    A = uw_ref.shape[1]

    img = img_ref[...]                                   # (Bb, L, F)

    # ---- U projection: one big MXU matmul over the whole batch block ----
    u_hs = jnp.dot(img.reshape(Bb * L, F), uw_ref[...],
                   preferred_element_type=jnp.float32)   # (Bb*L, A)
    u_hs = u_hs.reshape(Bb, L, A)

    # ---- W projection + pre-combined bias (Ub + Wb) ----
    w_hs = jnp.dot(hid_ref[...], ww_ref[...],
                   preferred_element_type=jnp.float32) + bias_ref[...]  # (Bb, A)

    combined = jnp.tanh(u_hs + w_hs[:, None, :])         # (Bb, L, A)

    # ---- Score projection as VPU multiply + lane reduce (no N=1 matmul).
    # Ab is omitted: a constant added to every score cancels in the softmax.
    scores = jnp.sum(combined * aw_ref[...][None, :, :], axis=-1)  # (Bb, L)

    # ---- Lane-dense, numerically stable softmax over L ----
    m = jnp.max(scores, axis=-1, keepdims=True)          # (Bb, 1)
    e = jnp.exp(scores - m)                              # (Bb, L)
    s = jnp.sum(e, axis=-1, keepdims=True)               # (Bb, 1)
    inv = pl.reciprocal(s, approx=True)                  # EUP vrcp
    inv = inv * (2.0 - s * inv)                          # one Newton step -> ~f32 exact
    alpha = e * inv                                      # (Bb, L)

    # ---- Context vector on the MXU: (Bb,1,L) @ (Bb,L,F) -> (Bb,1,F) ----
    ctx = jnp.einsum('bql,blf->bqf', alpha[:, None, :], img,
                     preferred_element_type=jnp.float32)  # (Bb, 1, F)

    alpha_ref[...] = alpha.astype(alpha_ref.dtype)        # (Bb, L) lane-dense
    ctx_ref[...] = ctx.reshape(Bb, F).astype(ctx_ref.dtype)  # (Bb, F) lane-dense


def attention_layer(img_features, hidden_state, params, *, b_blk=None):
    B, L, F = img_features.shape
    H = hidden_state.shape[-1]
    A = params["Uw"].shape[1]

    # Batch block: either the full batch (small B) or a multiple of 8 so the
    # (B_blk, ...) blocks satisfy the (8, 128) second-minor tiling rule.
    # Prefer >= 2 grid steps when possible so both v7x TensorCores get work.
    if b_blk is None:
        b_blk = B
        for cand in (64, 32, 16, 8):
            if B % cand == 0 and B // cand >= 2:
                b_blk = cand
                break
    assert B % b_blk == 0 and (b_blk == B or b_blk % 8 == 0)
    grid = (B // b_blk,)

    # Fold the two linear biases into one (added once per batch row) and turn
    # the (A, 1) score weight into a lane-dense row vector.
    bias = (params["Ub"] + params["Wb"]).reshape(1, A)
    aw_row = params["Aw"].reshape(1, A)

    # Explicit VMEM budget: double-buffered I/O blocks + resident weights +
    # intermediates, clamped to stay within every generation's VMEM.
    itemsize = 4
    io_block = b_blk * (L * F + H + L + F)
    resident = F * A + H * A + 2 * A
    interm = 4 * b_blk * L * A
    vmem_limit = int(min(max(2 * itemsize * (2 * io_block + resident + interm),
                             32 * 1024 * 1024),
                         64 * 1024 * 1024))

    alpha, ctx = pl.pallas_call(
        attention_kernel,
        out_shape=(
            jax.ShapeDtypeStruct((B, L), jnp.float32),
            jax.ShapeDtypeStruct((B, F), jnp.float32),
        ),
        grid_spec=pltpu.PrefetchScalarGridSpec(
            num_scalar_prefetch=0,
            grid=grid,
            in_specs=[
                pl.BlockSpec((b_blk, L, F), lambda b: (b, 0, 0)),  # img_features
                pl.BlockSpec((b_blk, H), lambda b: (b, 0)),        # hidden_state
                pl.BlockSpec((F, A), lambda b: (0, 0)),            # U weight (resident)
                pl.BlockSpec((H, A), lambda b: (0, 0)),            # W weight (resident)
                pl.BlockSpec((1, A), lambda b: (0, 0)),            # Ub + Wb
                pl.BlockSpec((1, A), lambda b: (0, 0)),            # A weight (row)
            ],
            out_specs=[
                pl.BlockSpec((b_blk, L), lambda b: (b, 0)),        # alpha
                pl.BlockSpec((b_blk, F), lambda b: (b, 0)),        # context
            ],
        ),
        compiler_params=pltpu.CompilerParams(
            dimension_semantics=("parallel",),
            vmem_limit_bytes=vmem_limit,
        ),
    )(img_features, hidden_state, params["Uw"], params["Ww"], bias, aw_row)

    return alpha, ctx


def attention_ref(img, hid, p):
    """Pure-JAX reference mirroring the PyTorch forward."""
    u = img @ p["Uw"] + p["Ub"]                      # (B, L, A)
    w = hid @ p["Ww"] + p["Wb"]                      # (B, A)
    comb = jnp.tanh(u + w[:, None, :])               # (B, L, A)
    sc = (comb @ p["Aw"] + p["Ab"])[..., 0]          # (B, L)
    alpha = jax.nn.softmax(sc, axis=1)               # (B, L)
    ctx = (img * alpha[..., None]).sum(axis=1)       # (B, F)
    return alpha, ctx


def init_params(key, features_dims, hidden_state_dims, attention_dims):
    """Deterministic init (uniform +-1/sqrt(fan_in), like nn.Linear)."""
    ks = jax.random.split(key, 6)

    def lin(kw, kb, fan_in, fan_out):
        bound = 1.0 / np.sqrt(fan_in)
        w = jax.random.uniform(kw, (fan_in, fan_out), jnp.float32, -bound, bound)
        b = jax.random.uniform(kb, (1, fan_out), jnp.float32, -bound, bound)
        return w, b

    Uw, Ub = lin(ks[0], ks[1], features_dims, attention_dims)
    Ww, Wb = lin(ks[2], ks[3], hidden_state_dims, attention_dims)
    Aw, Ab = lin(ks[4], ks[5], attention_dims, 1)
    return {"Uw": Uw, "Ub": Ub, "Ww": Ww, "Wb": Wb, "Aw": Aw, "Ab": Ab}


def _run_case(key, B, L, F, H, A, atol, rtol):
    k_img, k_hid, k_par = jax.random.split(key, 3)
    img = jax.random.normal(k_img, (B, L, F), jnp.float32)
    hid = jax.random.normal(k_hid, (B, H), jnp.float32)
    params = init_params(k_par, F, H, A)

    alpha, ctx = attention_layer(img, hid, params)
    alpha = jax.block_until_ready(alpha)
    ctx = jax.block_until_ready(ctx)

    alpha_ref, ctx_ref = attention_ref(img, hid, params)

    assert alpha.shape == (B, L) and ctx.shape == (B, F)
    assert np.allclose(np.asarray(alpha), np.asarray(alpha_ref), atol=atol, rtol=rtol)
    assert np.allclose(np.asarray(ctx), np.asarray(ctx_ref), atol=atol, rtol=rtol)


if __name__ == "__main__":
    key = jax.random.PRNGKey(0)
    k1, k2 = jax.random.split(key)

    # Small config matching the module defaults (whole batch in one block).
    _run_case(k1, B=2, L=8, F=32, H=32, A=32, atol=1e-5, rtol=1e-5)

    # Batch-blocked config: B_blk=8, grid=(2,), weights stay VMEM-resident.
    # Looser tolerance: the default-precision TPU matmul tiles differently
    # from the XLA reference at these contraction sizes.
    _run_case(k2, B=16, L=8, F=128, H=64, A=64, atol=2e-2, rtol=2e-2)

    print("KERNEL_OK")
</pallas_src>

<mosaic_0001>
module attributes {stable_mosaic.version = 11 : i64} {
  func.func @attention_kernel(%arg0: i32, %arg1: memref<2x8x32xf32, #tpu.memory_space<vmem>>, %arg2: memref<2x32xf32, #tpu.memory_space<vmem>>, %arg3: memref<32x32xf32, #tpu.memory_space<vmem>>, %arg4: memref<32x32xf32, #tpu.memory_space<vmem>>, %arg5: memref<1x32xf32, #tpu.memory_space<vmem>>, %arg6: memref<1x32xf32, #tpu.memory_space<vmem>>, %arg7: memref<2x8xf32, #tpu.memory_space<vmem>>, %arg8: memref<2x32xf32, #tpu.memory_space<vmem>>) attributes {dimension_semantics = [#tpu.dimension_semantics<parallel>], iteration_bounds = array<i64: 1>, scalar_prefetch = 0 : i64, scratch_operands = 0 : i64, tpu.core_type = #tpu.core_type<tc>, window_params = [{transform_indices = @transform_0, window_bounds = array<i64: 2, 8, 32>}, {transform_indices = @transform_1, window_bounds = array<i64: 2, 32>}, {pipeline_mode = #tpu.pipeline_mode<synchronous>, transform_indices = @transform_2, window_bounds = array<i64: 32, 32>}, {pipeline_mode = #tpu.pipeline_mode<synchronous>, transform_indices = @transform_3, window_bounds = array<i64: 32, 32>}, {pipeline_mode = #tpu.pipeline_mode<synchronous>, transform_indices = @transform_4, window_bounds = array<i64: 1, 32>}, {pipeline_mode = #tpu.pipeline_mode<synchronous>, transform_indices = @transform_5, window_bounds = array<i64: 1, 32>}, {transform_indices = @transform_6, window_bounds = array<i64: 2, 8>}, {transform_indices = @transform_7, window_bounds = array<i64: 2, 32>}]} {
    %c0 = arith.constant 0 : index
    %c0_0 = arith.constant 0 : index
    %c0_1 = arith.constant 0 : index
    %0 = vector.load %arg1[%c0, %c0_0, %c0_1] : memref<2x8x32xf32, #tpu.memory_space<vmem>>, vector<2x8x32xf32>
    %1 = vector.shape_cast %0 : vector<2x8x32xf32> to vector<16x32xf32>
    %c0_2 = arith.constant 0 : index
    %c0_3 = arith.constant 0 : index
    %2 = vector.load %arg3[%c0_2, %c0_3] : memref<32x32xf32, #tpu.memory_space<vmem>>, vector<32x32xf32>
    %cst = arith.constant dense<0.000000e+00> : vector<16x32xf32>
    %3 = tpu.matmul %1, %2, %cst {dimension_numbers = #tpu.dot_dimension_numbers<[1], [0], [0], [1], [0, 0, 1, 1], [], []>} : vector<16x32xf32>, vector<32x32xf32>, vector<16x32xf32> -> vector<16x32xf32>
    %4 = vector.shape_cast %3 : vector<16x32xf32> to vector<2x8x32xf32>
    %c0_4 = arith.constant 0 : index
    %c0_5 = arith.constant 0 : index
    %5 = vector.load %arg2[%c0_4, %c0_5] : memref<2x32xf32, #tpu.memory_space<vmem>>, vector<2x32xf32>
    %c0_6 = arith.constant 0 : index
    %c0_7 = arith.constant 0 : index
    %6 = vector.load %arg4[%c0_6, %c0_7] : memref<32x32xf32, #tpu.memory_space<vmem>>, vector<32x32xf32>
    %cst_8 = arith.constant dense<0.000000e+00> : vector<2x32xf32>
    %7 = tpu.matmul %5, %6, %cst_8 {dimension_numbers = #tpu.dot_dimension_numbers<[1], [0], [0], [1], [0, 0, 1, 1], [], []>} : vector<2x32xf32>, vector<32x32xf32>, vector<2x32xf32> -> vector<2x32xf32>
    %c0_9 = arith.constant 0 : index
    %c0_10 = arith.constant 0 : index
    %8 = vector.load %arg5[%c0_9, %c0_10] : memref<1x32xf32, #tpu.memory_space<vmem>>, vector<1x32xf32>
    %9 = vector.broadcast %8 : vector<1x32xf32> to vector<2x32xf32>
    %10 = arith.addf %7, %9 : vector<2x32xf32>
    %11 = vector.shape_cast %10 : vector<2x32xf32> to vector<2x1x32xf32>
    %12 = vector.broadcast %11 : vector<2x1x32xf32> to vector<2x8x32xf32>
    %13 = arith.addf %4, %12 : vector<2x8x32xf32>
    %14 = math.tanh %13 : vector<2x8x32xf32>
    %c0_11 = arith.constant 0 : index
    %c0_12 = arith.constant 0 : index
    %15 = vector.load %arg6[%c0_11, %c0_12] : memref<1x32xf32, #tpu.memory_space<vmem>>, vector<1x32xf32>
    %16 = vector.shape_cast %15 : vector<1x32xf32> to vector<1x1x32xf32>
    %17 = vector.broadcast %16 : vector<1x1x32xf32> to vector<2x8x32xf32>
    %18 = arith.mulf %14, %17 : vector<2x8x32xf32>
    %cst_13 = arith.constant dense<0.000000e+00> : vector<2x8xf32>
    %19 = vector.multi_reduction <add>, %18, %cst_13 [2] : vector<2x8x32xf32> to vector<2x8xf32>
    %cst_14 = arith.constant dense<0xFF800000> : vector<2xf32>
    %20 = vector.multi_reduction <maximumf>, %19, %cst_14 [1] : vector<2x8xf32> to vector<2xf32>
    %21 = vector.shape_cast %20 : vector<2xf32> to vector<2x1xf32>
    %22 = vector.broadcast %21 : vector<2x1xf32> to vector<2x8xf32>
    %23 = arith.subf %19, %22 : vector<2x8xf32>
    %24 = math.exp %23 : vector<2x8xf32>
    %cst_15 = arith.constant dense<0.000000e+00> : vector<2xf32>
    %25 = vector.multi_reduction <add>, %24, %cst_15 [1] : vector<2x8xf32> to vector<2xf32>
    %26 = vector.shape_cast %25 : vector<2xf32> to vector<2x1xf32>
    %27 = tpu.reciprocal %26 {approx = true} : vector<2x1xf32> -> vector<2x1xf32>
    %28 = arith.mulf %26, %27 : vector<2x1xf32>
    %cst_16 = arith.constant 2.000000e+00 : f32
    %29 = vector.broadcast %cst_16 : f32 to vector<2x1xf32>
    %30 = arith.subf %29, %28 : vector<2x1xf32>
    %31 = arith.mulf %27, %30 : vector<2x1xf32>
    %32 = vector.broadcast %31 : vector<2x1xf32> to vector<2x8xf32>
    %33 = arith.mulf %24, %32 : vector<2x8xf32>
    %34 = vector.shape_cast %33 : vector<2x8xf32> to vector<2x1x8xf32>
    "tpu.trace_start"() <{level = 10 : i32, message = "bql,blf->bqf"}> : () -> ()
    %cst_17 = arith.constant dense<0.000000e+00> : vector<2x1x32xf32>
    %35 = tpu.matmul %34, %0, %cst_17 {dimension_numbers = #tpu.dot_dimension_numbers<[2], [1], [1], [2], [0, 0, 0, 1, 1, 2], [0], [0]>} : vector<2x1x8xf32>, vector<2x8x32xf32>, vector<2x1x32xf32> -> vector<2x1x32xf32>
    "tpu.trace_stop"() : () -> ()
    %c0_18 = arith.constant 0 : index
    %c0_19 = arith.constant 0 : index
    %36 = vector.load %arg7[%c0_18, %c0_19] : memref<2x8xf32, #tpu.memory_space<vmem>>, vector<2x8xf32>
    tpu.vector_store %arg7[%c0_18, %c0_19], %33 {strides = array<i32>} : memref<2x8xf32, #tpu.memory_space<vmem>>, vector<2x8xf32>,
    %37 = vector.shape_cast %35 : vector<2x1x32xf32> to vector<2x32xf32>
    %c0_20 = arith.constant 0 : index
    %c0_21 = arith.constant 0 : index
    %38 = vector.load %arg8[%c0_20, %c0_21] : memref<2x32xf32, #tpu.memory_space<vmem>>, vector<2x32xf32>
    tpu.vector_store %arg8[%c0_20, %c0_21], %37 {strides = array<i32>} : memref<2x32xf32, #tpu.memory_space<vmem>>, vector<2x32xf32>,
    return
  }
  func.func @transform_0(%arg0: i32) -> (i32, i32, i32) {
    %c0_i32 = arith.constant 0 : i32
    %c0_i32_0 = arith.constant 0 : i32
    %c0_i32_1 = arith.constant 0 : i32
    return %arg0, %c0_i32, %c0_i32_0 : i32, i32, i32
  }
  func.func @transform_1(%arg0: i32) -> (i32, i32) {
    %c0_i32 = arith.constant 0 : i32
    %c0_i32_0 = arith.constant 0 : i32
    return %arg0, %c0_i32 : i32, i32
  }
  func.func @transform_2(%arg0: i32) -> (i32, i32) {
    %c0_i32 = arith.constant 0 : i32
    %c0_i32_0 = arith.constant 0 : i32
    %c0_i32_1 = arith.constant 0 : i32
    return %c0_i32, %c0_i32_0 : i32, i32
  }
  func.func @transform_3(%arg0: i32) -> (i32, i32) {
    %c0_i32 = arith.constant 0 : i32
    %c0_i32_0 = arith.constant 0 : i32
    %c0_i32_1 = arith.constant 0 : i32
    return %c0_i32, %c0_i32_0 : i32, i32
  }
  func.func @transform_4(%arg0: i32) -> (i32, i32) {
    %c0_i32 = arith.constant 0 : i32
    %c0_i32_0 = arith.constant 0 : i32
    %c0_i32_1 = arith.constant 0 : i32
    return %c0_i32, %c0_i32_0 : i32, i32
  }
  func.func @transform_5(%arg0: i32) -> (i32, i32) {
    %c0_i32 = arith.constant 0 : i32
    %c0_i32_0 = arith.constant 0 : i32
    %c0_i32_1 = arith.constant 0 : i32
    return %c0_i32, %c0_i32_0 : i32, i32
  }
  func.func @transform_6(%arg0: i32) -> (i32, i32) {
    %c0_i32 = arith.constant 0 : i32
    %c0_i32_0 = arith.constant 0 : i32
    return %arg0, %c0_i32 : i32, i32
  }
  func.func @transform_7(%arg0: i32) -> (i32, i32) {
    %c0_i32 = arith.constant 0 : i32
    %c0_i32_0 = arith.constant 0 : i32
    return %arg0, %c0_i32 : i32, i32
  }
}

</mosaic_0001>

<llo_original>
// kernel: tpu_custom_call.1
$region0: #{tpu_custom_call.1}
  #allocation0 [shape = 'u32[]', space=smem, size = 0x4, offset = 0x4, fixed_abs, tag = 'smem constant byte address 0x4 - core index']
  #allocation1 [shape = 'u32[72,128]{1,0:T(1,128)}', space=vmem, size = 0x9000, scoped, tag = 'internal scratch']
  %s0 = inlined_call_operand.hbm [shape: f32[2,8,32], index: 0, kind: input, shape index: {}]
  %s1 = inlined_call_operand.hbm [shape: f32[2,32], index: 1, kind: input, shape index: {}]
  %s2 = inlined_call_operand.hbm [shape: f32[32,32], index: 2, kind: input, shape index: {}]
  %s3 = inlined_call_operand.hbm [shape: f32[32,32], index: 3, kind: input, shape index: {}]
  %s4 = inlined_call_operand.vmem [shape: f32[1,32], index: 4, kind: input, shape index: {}]
  %s5 = inlined_call_operand.vmem [shape: f32[1,32], index: 5, kind: input, shape index: {}]
  %s6 = inlined_call_operand.hbm [shape: f32[2,8], index: 6, kind: output, shape index: {0}]
  %s7 = inlined_call_operand.hbm [shape: f32[2,32], index: 7, kind: output, shape index: {1}]
  %8 = xla_tuple %s6, %s7
  %s9 = sld [smem:[#allocation0]]
  $region58: #{tpu_custom_call.1} parent=0
    _
  %s11 = ssub.s32 1, %s9
  %s12 = scalar_select 0, %s11, %s9
  $region1: #{tpu_custom_call.1} parent=0
    #allocation2 [shape = 'u8[8192]{0}', space=vmem, size = 0x2000, scoped, tag = 'input window, operand 0, single buffered']
    #allocation3 [shape = 's32[1]{0}', space=sflag, size = 0x4, scoped, tag = 'scoped memory for tpu_custom_call.1']
    #allocation4 [shape = 's32[1]{0}', space=sflag, size = 0x4, scoped, tag = 'scoped memory for tpu_custom_call.1']
    #allocation5 [shape = 'u8[1024]{0}', space=vmem, size = 0x400, scoped, tag = 'input window, operand 1, single buffered']
    #allocation6 [shape = 's32[1]{0}', space=sflag, size = 0x4, scoped, tag = 'scoped memory for tpu_custom_call.1']
    #allocation7 [shape = 'u8[16384]{0}', space=vmem, size = 0x4000, scoped, tag = 'input window, operand 2, single buffered']
    #allocation8 [shape = 'u8[16384]{0}', space=vmem, size = 0x4000, scoped, tag = 'input window, operand 3, single buffered']
    #allocation9 [shape = 's32[1]{0}', space=sflag, size = 0x4, scoped, tag = 'scoped memory for tpu_custom_call.1']
    #allocation10 [shape = 'u8[1024]{0}', space=vmem, size = 0x400, scoped, tag = 'output window, operand 0, single buffered']
    #allocation11 [shape = 'u8[1024]{0}', space=vmem, size = 0x400, scoped, tag = 'output window, operand 1, single buffered']
    #allocation12 [shape = 's32[1]{0}', space=sflag, size = 0x4, scoped, tag = 'scoped memory for tpu_custom_call.1']
    %13 = vsyncpa [#allocation3], 0
    %14 = vsyncpa [#allocation6], 0
    %15 = vsyncpa [#allocation9], 0
    %16 = vsyncpa [#allocation4], 0
    %17 = vsyncpa [#allocation12], 0
    // Predicated region
    $region2: #{tpu_custom_call.1} parent=1 // pred_check
      _
    $region3: #{tpu_custom_call.1} parent=1 // pred_check_branch
      %19 = sbr.rel (0) target = $region5
    $region4: #{tpu_custom_call.1} parent=1 // pred_region
      %21 = vsyncadd [#allocation3], 0
      %s22 = sshll.u32 %s0, 4
      %s23 = int_to_ptr.hbm [resolvable:$true] %s22
      %s24 = sshll.u32 [#allocation2], 4
      %s25 = int_to_ptr.vmem [resolvable:$true] %s24
      %30 = dma.hbm_to_vmem [thread:$0]  %s23, 256, %s25, [#allocation3], 128, 128, 8
    $region5: #{tpu_custom_call.1} parent=1 // pred_fallthru
      _
    // Predicated region
    $region6: #{tpu_custom_call.1} parent=1 // pred_check
      _
    $region7: #{tpu_custom_call.1} parent=1 // pred_check_branch
      %32 = sbr.rel (0) target = $region9
    $region8: #{tpu_custom_call.1} parent=1 // pred_region
      %34 = vsyncadd [#allocation6], 0
      %s36 = sshll.u32 %s1, 4
      %s37 = int_to_ptr.hbm [resolvable:$true] %s36
      %s38 = sshll.u32 [#allocation5], 4
      %s39 = int_to_ptr.vmem [resolvable:$true] %s38
      %41 = dma.hbm_to_vmem [thread:$0]  %s37, 32, %s39, [#allocation6]
    $region9: #{tpu_custom_call.1} parent=1 // pred_fallthru
      _
    // Predicated region
    $region10: #{tpu_custom_call.1} parent=1 // pred_check
      _
    $region11: #{tpu_custom_call.1} parent=1 // pred_check_branch
      %43 = sbr.rel (0) target = $region13
    $region12: #{tpu_custom_call.1} parent=1 // pred_region
      %45 = vsyncadd [#allocation6], 0
      %s46 = sshll.u32 %s2, 4
      %s47 = int_to_ptr.hbm [resolvable:$true] %s46
      %s48 = sshll.u32 [#allocation7], 4
      %s49 = int_to_ptr.vmem [resolvable:$true] %s48
      %54 = dma.hbm_to_vmem [thread:$0]  %s47, 512, %s49, [#allocation6], 128, 128, 8
    $region13: #{tpu_custom_call.1} parent=1 // pred_fallthru
      _
    // Predicated region
    $region14: #{tpu_custom_call.1} parent=1 // pred_check
      _
    $region15: #{tpu_custom_call.1} parent=1 // pred_check_branch
      %56 = sbr.rel (0) target = $region17
    $region16: #{tpu_custom_call.1} parent=1 // pred_region
      %58 = vsyncadd [#allocation9], 0
      %s59 = sshll.u32 %s3, 4
      %s60 = int_to_ptr.hbm [resolvable:$true] %s59
      %s61 = sshll.u32 [#allocation8], 4
      %s62 = int_to_ptr.vmem [resolvable:$true] %s61
      %67 = dma.hbm_to_vmem [thread:$0]  %s60, 512, %s62, [#allocation9], 128, 128, 8
    $region17: #{tpu_custom_call.1} parent=1 // pred_fallthru
      _
    // Predicated region
    $region18: #{tpu_custom_call.1} parent=1 // pred_check
      _
    $region19: #{tpu_custom_call.1} parent=1 // pred_check_branch
      %69 = sbr.rel (0) target = $region21
    $region20: #{tpu_custom_call.1} parent=1 // pred_region
      _
    $region21: #{tpu_custom_call.1} parent=1 // pred_fallthru
      _
    // Predicated region
    $region22: #{tpu_custom_call.1} parent=1 // pred_check
      _
    $region23: #{tpu_custom_call.1} parent=1 // pred_check_branch
      %71 = sbr.rel (0) target = $region25
    $region24: #{tpu_custom_call.1} parent=1 // pred_region
      _
    $region25: #{tpu_custom_call.1} parent=1 // pred_fallthru
      _
    // Predicated region
    $region26: #{tpu_custom_call.1} parent=1 // pred_check
      _
    $region27: #{tpu_custom_call.1} parent=1 // pred_check_branch
      %73 = sbr.rel (0) target = $region29
    $region28: #{tpu_custom_call.1} parent=1 // pred_region
      %75 = dma.done [#allocation3], 256
    $region29: #{tpu_custom_call.1} parent=1 // pred_fallthru
      _
    // Predicated region
    $region30: #{tpu_custom_call.1} parent=1 // pred_check
      _
    $region31: #{tpu_custom_call.1} parent=1 // pred_check_branch
      %77 = sbr.rel (0) target = $region33
    $region32: #{tpu_custom_call.1} parent=1 // pred_region
      %79 = dma.done [#allocation6], 32
    $region33: #{tpu_custom_call.1} parent=1 // pred_fallthru
      _
    // Predicated region
    $region34: #{tpu_custom_call.1} parent=1 // pred_check
      _
    $region35: #{tpu_custom_call.1} parent=1 // pred_check_branch
      %81 = sbr.rel (0) target = $region37
    $region36: #{tpu_custom_call.1} parent=1 // pred_region
      %83 = dma.done [#allocation6], 512
    $region37: #{tpu_custom_call.1} parent=1 // pred_fallthru
      _
    // Predicated region
    $region38: #{tpu_custom_call.1} parent=1 // pred_check
      _
    $region39: #{tpu_custom_call.1} parent=1 // pred_check_branch
      %85 = sbr.rel (0) target = $region41
    $region40: #{tpu_custom_call.1} parent=1 // pred_region
      %87 = dma.done [#allocation9], 512
    $region41: #{tpu_custom_call.1} parent=1 // pred_fallthru
      _
    %v88 = vld [vmem:[#allocation2] sm:$0xff]
    %v89 = vld [vmem:[#allocation2 + $0x8] sm:$0xff]
    %v90 = vld [vmem:[#allocation7] sm:$0xff]
    %v91 = vld [vmem:[#allocation7 + $0x8] sm:$0xff]
    %v92 = vld [vmem:[#allocation7 + $0x10] sm:$0xff]
    %v93 = vld [vmem:[#allocation7 + $0x18] sm:$0xff]
    %vm94 = vcmask 261120
    %v96 = vsel %vm94, %v88, 0
    %v99 = vsel %vm94, %v89, 0
    %101 = vmatpush.msra.mxu0 0.0
    %102 = vmatpush.msra.mxu0 0.0
    %103 = vmatpush.msra.mxu0 0.0
    %104 = vmatpush.msra.mxu0 0.0
    %105 = vmatpush.msra.mxu0 0.0
    %106 = vmatpush.msra.mxu0 0.0
    %107 = vmatpush.msra.mxu0 0.0
    %108 = vmatpush.msra.mxu0 0.0
    %109 = vmatpush.msra.mxu0 0.0
    %110 = vmatpush.msra.mxu0 0.0
    %111 = vmatpush.msra.mxu0 0.0
    %112 = vmatpush.msra.mxu0 0.0
    %113 = vmatpush.msra.mxu0 %v93
    %114 = vmatpush.msra.mxu0 %v92
    %115 = vmatpush.msra.mxu0 %v91
    %116 = vmatpush.msra.mxu0 %v90
    %117 = vmatmul.f32.gmra.mxu0 %v96
    %v118 = vpop.f32.mrf.mxu0
    %v119 = vadd.f32 0.0, %v118
    %120 = vmatmul.f32.gmra.mxu0 %v99
    %v121 = vpop.f32.mrf.mxu0
    %v122 = vadd.f32 0.0, %v121
    %123 = vdwg.mxu0
    %v124 = vld [vmem:[#allocation5] sm:$0x3]
    %v125 = vld [vmem:[#allocation8] sm:$0xff]
    %v126 = vld [vmem:[#allocation8 + $0x8] sm:$0xff]
    %v127 = vld [vmem:[#allocation8 + $0x10] sm:$0xff]
    %v128 = vld [vmem:[#allocation8 + $0x18] sm:$0xff]
    %v129 = vld [vmem:[%s4] sm:$0x1]
    %v131 = vperm.slane %v129, 0
    %v134 = vsel %vm94, %v124, 0
    %136 = vmatpush.msra.mxu0 0.0
    %137 = vmatpush.msra.mxu0 0.0
    %138 = vmatpush.msra.mxu0 0.0
    %139 = vmatpush.msra.mxu0 0.0
    %140 = vmatpush.msra.mxu0 0.0
    %141 = vmatpush.msra.mxu0 0.0
    %142 = vmatpush.msra.mxu0 0.0
    %143 = vmatpush.msra.mxu0 0.0
    %144 = vmatpush.msra.mxu0 0.0
    %145 = vmatpush.msra.mxu0 0.0
    %146 = vmatpush.msra.mxu0 0.0
    %147 = vmatpush.msra.mxu0 0.0
    %148 = vmatpush.msra.mxu0 %v128
    %149 = vmatpush.msra.mxu0 %v127
    %150 = vmatpush.msra.mxu0 %v126
    %151 = vmatpush.msra.mxu0 %v125
    %152 = vmatmul.f32.gmra.mxu0 %v134
    %v153 = vpop.f32.mrf.mxu0
    %v154 = vadd.f32 %v131, %v153
    %155 = vdwg.mxu0
    %v157 = vrot.slane %v154, 1
    %v158 = vperm.slane %v154, 0
    %v159 = vperm.slane %v157, 0
    %v162 = vadd.f32 %v119, %v158
    %v163 = vadd.f32 %v122, %v159
    %v164 = vtanh.pop %v162
    %v165 = vtanh.pop %v163
    %v166 = vld [vmem:[%s5] sm:$0x1]
    %v168 = vperm.slane %v166, 0
    %v170 = vmul.f32 %v164, %v168
    %v171 = vmul.f32 %v165, %v168
    %v172 = vsel %vm94, %v170, 0.0
    %173 = vadd.xlane.f32.xlu0 %v172
    %v174 = vpop.xlane.xlu0 %173
    %v175 = vsel %vm94, %v171, 0.0
    %176 = vadd.xlane.f32.xlu0 %v175
    %v177 = vpop.xlane.xlu0 %176
    %v180 = vlaneseq
    %v181 = vand.u32 %v180, 127
    %v182 = vperm.slane %v174, %v181
    %v183 = vperm.slane %v177, %v181
    %vm184 = vcmask 1041409
    %v185 = vsel %vm184, %v183, %v182
    %vm187 = vcmask 58368
    %v188 = vsel %vm187, %v185, -inf
    %189 = vmax.xlane.f32.xlu0 %v188
    %v190 = vpop.xlane.xlu0 %189
    %v192 = vperm.slane %v190, 0
    %v193 = vperm.slane %v190, 1
    %v196 = vsub.f32 %v174, %v192
    %v197 = vsub.f32 %v177, %v193
    %v198 = vmul.f32 %v196, 1.442695
    %v199 = vpow.pop %v198
    %v200 = vmul.f32 %v197, 1.442695
    %v201 = vpow.pop %v200
    %204 = vset.pattern.permute.xlu0 0
    %205 = vperm.xlu0 %204, %v199
    %v206 = vpop.permute.xlu0 %205
    %207 = vset.pattern.permute.xlu0 0
    %208 = vperm.xlu0 %207, %v201
    %v209 = vpop.permute.xlu0 %208
    %v210 = vperm.slane %v206, %v181
    %v211 = vperm.slane %v209, %v181
    %v212 = vsel %vm184, %v211, %v210
    %v214 = vsel %vm187, %v212, 0.0
    %215 = vadd.xlane.f32.xlu0 %v214
    %v216 = vpop.xlane.xlu0 %215
    %v217 = vrcp.pop %v216
    %v218 = vmul.f32 %v216, %v217
    %v219 = vsub.f32 2.0, %v218
    %v220 = vmul.f32 %v217, %v219
    %v222 = vperm.slane %v220, 0
    %v223 = vperm.slane %v220, 1
    %v226 = vmul.f32 %v199, %v222
    %v227 = vmul.f32 %v201, %v223
    %229 = vset.pattern.permute.xlu0 0
    %230 = vperm.xlu0 %229, %v226
    %v231 = vpop.permute.xlu0 %230
    %v232 = vperm.slane %v231, %v181
    %vm233 = vcmask 64512
    %v234 = vsel %vm233, %v232, 0
    %236 = vmatpush.msra.mxu0 0.0
    %237 = vmatpush.msra.mxu0 0.0
    %238 = vmatpush.msra.mxu0 0.0
    %239 = vmatpush.msra.mxu0 0.0
    %240 = vmatpush.msra.mxu0 0.0
    %241 = vmatpush.msra.mxu0 0.0
    %242 = vmatpush.msra.mxu0 0.0
    %243 = vmatpush.msra.mxu0 0.0
    %244 = vmatpush.msra.mxu0 0.0
    %245 = vmatpush.msra.mxu0 0.0
    %246 = vmatpush.msra.mxu0 0.0
    %247 = vmatpush.msra.mxu0 0.0
    %248 = vmatpush.msra.mxu0 0.0
    %249 = vmatpush.msra.mxu0 0.0
    %250 = vmatpush.msra.mxu0 0.0
    %251 = vmatpush.msra.mxu0 %v88
    %252 = vmatmul.f32.gmra.mxu0 %v234
    %v253 = vpop.f32.mrf.mxu0
    %v254 = vadd.f32 0.0, %v253
    %255 = vdwg.mxu0
    %257 = vset.pattern.permute.xlu0 0
    %258 = vperm.xlu0 %257, %v227
    %v259 = vpop.permute.xlu0 %258
    %v260 = vperm.slane %v259, %v181
    %v261 = vsel %vm233, %v260, 0
    %263 = vmatpush.msra.mxu0 0.0
    %264 = vmatpush.msra.mxu0 0.0
    %265 = vmatpush.msra.mxu0 0.0
    %266 = vmatpush.msra.mxu0 0.0
    %267 = vmatpush.msra.mxu0 0.0
    %268 = vmatpush.msra.mxu0 0.0
    %269 = vmatpush.msra.mxu0 0.0
    %270 = vmatpush.msra.mxu0 0.0
    %271 = vmatpush.msra.mxu0 0.0
    %272 = vmatpush.msra.mxu0 0.0
    %273 = vmatpush.msra.mxu0 0.0
    %274 = vmatpush.msra.mxu0 0.0
    %275 = vmatpush.msra.mxu0 0.0
    %276 = vmatpush.msra.mxu0 0.0
    %277 = vmatpush.msra.mxu0 0.0
    %278 = vmatpush.msra.mxu0 %v89
    %279 = vmatmul.f32.gmra.mxu0 %v261
    %v280 = vpop.f32.mrf.mxu0
    %v281 = vadd.f32 0.0, %v280
    %282 = vdwg.mxu0
    %v283 = vsel %vm184, %v260, %v232
    %285 = vst.msk [vmem:[#allocation10] sm:$0x3] %vm187, %v283
    %v288 = vrot.slane %v281, 7
    %v289 = vsel %vm184, %v288, %v254
    %vm291 = vcmask 254976
    %292 = vst.msk [vmem:[#allocation11] sm:$0x3] %vm291, %v289
    // Predicated region
    $region42: #{tpu_custom_call.1} parent=1 // pred_check
      _
    $region43: #{tpu_custom_call.1} parent=1 // pred_check_branch
      %294 = sbr.rel (0) target = $region45
    $region44: #{tpu_custom_call.1} parent=1 // pred_region
      %296 = vsyncadd [#allocation4], 0
      %s298 = sshll.u32 [#allocation10], 4
      %s299 = int_to_ptr.vmem [resolvable:$true] %s298
      %s300 = sshll.u32 %s6, 4
      %s301 = int_to_ptr.hbm [resolvable:$true] %s300
      %303 = dma.vmem_to_hbm [thread:$0]  %s299, 32, %s301, [#allocation4]
    $region45: #{tpu_custom_call.1} parent=1 // pred_fallthru
      _
    // Predicated region
    $region46: #{tpu_custom_call.1} parent=1 // pred_check
      _
    $region47: #{tpu_custom_call.1} parent=1 // pred_check_branch
      %305 = sbr.rel (0) target = $region49
    $region48: #{tpu_custom_call.1} parent=1 // pred_region
      %307 = vsyncadd [#allocation12], 0
      %s309 = sshll.u32 [#allocation11], 4
      %s310 = int_to_ptr.vmem [resolvable:$true] %s309
      %s311 = sshll.u32 %s7, 4
      %s312 = int_to_ptr.hbm [resolvable:$true] %s311
      %314 = dma.vmem_to_hbm [thread:$0]  %s310, 32, %s312, [#allocation12]
    $region49: #{tpu_custom_call.1} parent=1 // pred_fallthru
      _
    // Predicated region
    $region50: #{tpu_custom_call.1} parent=1 // pred_check
      _
    $region51: #{tpu_custom_call.1} parent=1 // pred_check_branch
      %316 = sbr.rel (0) target = $region53
    $region52: #{tpu_custom_call.1} parent=1 // pred_region
      %318 = dma.done [#allocation4], 32
    $region53: #{tpu_custom_call.1} parent=1 // pred_fallthru
      _
    // Predicated region
    $region54: #{tpu_custom_call.1} parent=1 // pred_check
      _
    $region55: #{tpu_custom_call.1} parent=1 // pred_check_branch
      %320 = sbr.rel (0) target = $region57
    $region56: #{tpu_custom_call.1} parent=1 // pred_region
      %322 = dma.done [#allocation12], 32
    $region57: #{tpu_custom_call.1} parent=1 // pred_fallthru
      _
    %323 = vsyncpa [#allocation3], 1
    %324 = vsyncpa [#allocation6], 1
    %325 = vsyncpa [#allocation9], 1
    %326 = vsyncpa [#allocation4], 1
    %327 = vsyncpa [#allocation12], 1

</llo_original>
